<compile_context>
chip_gen: v7x
topology: tpu7x:2x2x1
jax: 0.10.0
libtpu: 0.0.40
codegen_flags: <defaults>
</compile_context>

<pallas_src>
import functools

import jax
import jax.numpy as jnp
from jax import lax
from jax.experimental import pallas as pl
from jax.experimental.pallas import tpu as pltpu

EPS = 1e-5
_MAX_TILE_LANES = 32768     # (8, T) f32 tile <= 1 MiB  -> ~4-5 MiB live VMEM
_FUSED_MAX_LANES = 32768    # single-block fused path threshold (fits v5e/v6e/v7x)


def _cdiv(a, b):
    return (a + b - 1) // b


def _conv_sigmoid(x, a, b1):
    """v[o, t] = sigmoid(sum_c W[o, c] * x[c, t] + b[o] + 1) via VPU/XLU roll-MAC.

    x : (C, T) lane-dense tile (channels on sublanes)
    a : (C, C) with a[o, r] = W[o, (o - r) % C]
    b1: (C, 1) conv bias with the first "+1" folded in
    """
    C = a.shape[0]
    acc = a[:, 0:1] * x                                  # r = 0: no roll
    for r in range(1, C):
        acc = acc + a[:, r:r + 1] * pltpu.roll(x, shift=r, axis=0)
    return jax.nn.sigmoid(acc + b1)


# ----------------------------- fused single-pass ----------------------------

def _fused_kernel(x_ref, a_ref, b1_ref, g_ref, be_ref, o_ref, *, m_valid, eps):
    x = x_ref[...]                                       # (C, Mp)
    a = a_ref[...]
    v = _conv_sigmoid(x, a, b1_ref[...])                 # exact fp32

    inv_m = 1.0 / m_valid
    col = lax.broadcasted_iota(jnp.int32, v.shape, 1)
    valid = col < m_valid                                # lane-padding mask (exact)

    vm = jnp.where(valid, v, 0.0)
    mean = jnp.sum(vm, axis=1, keepdims=True) * inv_m
    d = jnp.where(valid, v - mean, 0.0)
    var = jnp.sum(d * d, axis=1, keepdims=True) * inv_m  # exact two-pass variance

    inv_std = lax.rsqrt(var + eps)
    scale = g_ref[...] * inv_std
    shift = be_ref[...] + 1.0 - mean * scale             # BN shift + final "+1"
    o_ref[...] = (v * scale + shift).astype(o_ref.dtype)


# ----------------------------- two-phase (large) -----------------------------

def _stats_kernel(x_ref, a_ref, b1_ref, s1_ref, s2_ref, acc1, acc2):
    """Phase A: wide-scratch accumulation of sum(v) and sum((v-0.5)^2)."""
    si = pl.program_id(1)

    @pl.when(si == 0)
    def _init():
        acc1[...] = jnp.zeros_like(acc1)
        acc2[...] = jnp.zeros_like(acc2)

    v = _conv_sigmoid(x_ref[...], a_ref[...], b1_ref[...])   # (C, T)
    acc1[...] += v
    c = v - 0.5                                              # shifted squares:
    acc2[...] += c * c                                       # far less cancellation

    @pl.when(si == pl.num_programs(1) - 1)
    def _finalize():
        s1_ref[...] = jnp.sum(acc1[...], axis=1, keepdims=True)
        s2_ref[...] = jnp.sum(acc2[...], axis=1, keepdims=True)


def _apply_kernel(x_ref, a_ref, b1_ref, sc_ref, sh_ref, o_ref):
    """Phase B: out = sigmoid(Wx + b + 1) * scale + shift."""
    v = _conv_sigmoid(x_ref[...], a_ref[...], b1_ref[...])
    o_ref[...] = (v * sc_ref[...] + sh_ref[...]).astype(o_ref.dtype)


# --------------------------------- wrapper -----------------------------------

def model_forward(x_nchw, conv_w, conv_b, bn_gamma, bn_beta,
                  *, force_general=False, max_tile_lanes=_MAX_TILE_LANES):
    """x_nchw: (N, 8, H, W) float32. Returns (N, 8, H+2, W+2) float32."""
    N, C_in, H, W = x_nchw.shape
    C = conv_w.shape[0]
    assert C_in == C, "1x1 conv roll-MAC path requires C_in == C_out"
    Hp, Wp = H + 2, W + 2
    S = Hp * Wp
    M = N * S                       # valid (batch x padded-spatial) columns

    # conv padding=1 on a 1x1 conv == zero-pad spatially.  Fold batch+spatial
    # into the lane axis: (C, N*S) lane-dense, channels on sublanes.  Single
    # fused XLA copy (pad + reshape + transpose).
    x_p = jnp.pad(x_nchw.astype(jnp.float32), ((0, 0), (0, 0), (1, 1), (1, 1)))
    x2 = x_p.reshape(N, C, S).transpose(1, 0, 2).reshape(C, M)

    w2 = conv_w.reshape(C, C).astype(jnp.float32)
    b1 = (conv_b.astype(jnp.float32) + 1.0).reshape(C, 1)   # fold first "+1"
    # A[o, r] = W[o, (o - r) % C]  -> per-shift sublane weight vectors.
    o_idx = jnp.arange(C)[:, None]
    r_idx = jnp.arange(C)[None, :]
    A = w2[o_idx, (o_idx - r_idx) % C]                       # (C, C)
    gamma = bn_gamma.astype(jnp.float32)
    beta = bn_beta.astype(jnp.float32)

    # TODO(synk): PyTorch BN (train mode) also updates running_mean/running_var
    # buffers; only the forward output is produced here.

    if (M <= _FUSED_MAX_LANES) and (not force_general):
        # ---- fused single-pass: one launch, x read once, exact variance ----
        Mp = 128 * _cdiv(M, 128)
        x2p = jnp.pad(x2, ((0, 0), (0, Mp - M)))
        out2 = pl.pallas_call(
            functools.partial(_fused_kernel, m_valid=M, eps=EPS),
            out_shape=jax.ShapeDtypeStruct((C, Mp), jnp.float32),
            grid=(1,),
            in_specs=[
                pl.BlockSpec((C, Mp), lambda i: (0, 0)),
                pl.BlockSpec((C, C), lambda i: (0, 0)),
                pl.BlockSpec((C, 1), lambda i: (0, 0)),
                pl.BlockSpec((C, 1), lambda i: (0, 0)),
                pl.BlockSpec((C, 1), lambda i: (0, 0)),
            ],
            out_specs=pl.BlockSpec((C, Mp), lambda i: (0, 0)),
            compiler_params=pltpu.CompilerParams(
                dimension_semantics=("arbitrary",)),
        )(x2p, A, b1, gamma.reshape(C, 1), beta.reshape(C, 1))
    else:
        # ---- general two-phase path ----------------------------------------
        n_tiles = _cdiv(M, max_tile_lanes)
        SO = 2 if n_tiles >= 2 else 1            # parallel split for v7x 2xTC
        n_tiles = SO * _cdiv(n_tiles, SO)
        T = 128 * _cdiv(_cdiv(M, 128), n_tiles)
        Mp = n_tiles * T
        SI = n_tiles // SO
        x2p = jnp.pad(x2, ((0, 0), (0, Mp - M)))

        # phase A: per-channel sum & shifted sum-of-squares (partial per SO).
        s1, s2 = pl.pallas_call(
            _stats_kernel,
            out_shape=(jax.ShapeDtypeStruct((SO, C, 1), jnp.float32),
                       jax.ShapeDtypeStruct((SO, C, 1), jnp.float32)),
            grid=(SO, SI),
            in_specs=[
                pl.BlockSpec((C, T), lambda so, si: (0, so * SI + si)),
                pl.BlockSpec((C, C), lambda so, si: (0, 0)),
                pl.BlockSpec((C, 1), lambda so, si: (0, 0)),
            ],
            out_specs=(pl.BlockSpec((None, C, 1), lambda so, si: (so, 0, 0)),
                       pl.BlockSpec((None, C, 1), lambda so, si: (so, 0, 0))),
            scratch_shapes=[pltpu.VMEM((C, T), jnp.float32),
                            pltpu.VMEM((C, T), jnp.float32)],
            compiler_params=pltpu.CompilerParams(
                dimension_semantics=("parallel", "arbitrary")),
        )(x2p, A, b1)

        # glue: remove analytic contribution of the zero lane-padding columns
        # (their conv output is the constant sigmoid(b+1) per channel), then
        # fold BN affine + final "+1" into scale/shift.
        pad_cnt = float(Mp - M)
        p = jax.nn.sigmoid(b1[:, 0])                          # (C,)
        s1t = jnp.sum(s1[:, :, 0], axis=0) - pad_cnt * p
        s2t = jnp.sum(s2[:, :, 0], axis=0) - pad_cnt * (p - 0.5) ** 2
        mean = s1t / M
        var = jnp.maximum(s2t / M - (mean - 0.5) ** 2, 0.0)   # biased variance
        inv_std = lax.rsqrt(var + EPS)
        scale = (gamma * inv_std).reshape(C, 1)
        shift = (beta + 1.0 - mean * gamma * inv_std).reshape(C, 1)

        # phase B: recompute conv+sigmoid (cheap on VPU) and normalize.
        out2 = pl.pallas_call(
            _apply_kernel,
            out_shape=jax.ShapeDtypeStruct((C, Mp), jnp.float32),
            grid=(n_tiles,),
            in_specs=[
                pl.BlockSpec((C, T), lambda i: (0, i)),
                pl.BlockSpec((C, C), lambda i: (0, 0)),
                pl.BlockSpec((C, 1), lambda i: (0, 0)),
                pl.BlockSpec((C, 1), lambda i: (0, 0)),
                pl.BlockSpec((C, 1), lambda i: (0, 0)),
            ],
            out_specs=pl.BlockSpec((C, T), lambda i: (0, i)),
            compiler_params=pltpu.CompilerParams(
                dimension_semantics=("parallel",)),
        )(x2p, A, b1, scale, shift)

    # undo the lane-flattened layout
    y = out2[:, :M].reshape(C, N, S).transpose(1, 0, 2).reshape(N, C, Hp, Wp)
    return y


# --------------------------------- reference ---------------------------------

def _reference_forward(x, conv_w, conv_b, gamma, beta):
    """Pure-JAX reference of the PyTorch forward (training-mode BN)."""
    xp = jnp.pad(x, ((0, 0), (0, 0), (1, 1), (1, 1)))
    w = conv_w.reshape(conv_w.shape[0], conv_w.shape[1])
    v = jnp.einsum("oc,nchw->nohw", w, xp, precision=lax.Precision.HIGHEST)
    v = v + conv_b.reshape(1, -1, 1, 1)
    v = jax.nn.sigmoid(v + 1.0)
    mean = jnp.mean(v, axis=(0, 2, 3), keepdims=True)
    var = jnp.mean((v - mean) ** 2, axis=(0, 2, 3), keepdims=True)
    vn = (v - mean) * lax.rsqrt(var + EPS)
    vn = vn * gamma.reshape(1, -1, 1, 1) + beta.reshape(1, -1, 1, 1)
    return vn + 1.0


def init_params(key, c_in=8, c_out=8):
    # Mimic PyTorch Conv2d default init (fan_in = c_in * 1 * 1).
    k_w, k_b = jax.random.split(key)
    bound = 1.0 / jnp.sqrt(jnp.float32(c_in))
    conv_w = jax.random.uniform(k_w, (c_out, c_in, 1, 1), jnp.float32,
                                minval=-bound, maxval=bound)
    conv_b = jax.random.uniform(k_b, (c_out,), jnp.float32,
                                minval=-bound, maxval=bound)
    bn_gamma = jnp.ones((c_out,), jnp.float32)   # BatchNorm2d defaults
    bn_beta = jnp.zeros((c_out,), jnp.float32)
    return conv_w, conv_b, bn_gamma, bn_beta


if __name__ == "__main__":
    key = jax.random.PRNGKey(0)
    k_param, k_x = jax.random.split(key)
    conv_w, conv_b, bn_gamma, bn_beta = init_params(k_param)

    # Small NCHW input consistent with the module (8 input channels).
    x = jax.random.normal(k_x, (2, 8, 16, 16), jnp.float32)
    ref = _reference_forward(x, conv_w, conv_b, bn_gamma, bn_beta)

    # 1) fused single-pass path
    out = model_forward(x, conv_w, conv_b, bn_gamma, bn_beta)
    jax.block_until_ready(out)
    assert out.shape == (2, 8, 18, 18), out.shape
    assert jnp.allclose(out, ref, atol=2e-3, rtol=2e-3), \
        float(jnp.max(jnp.abs(out - ref)))

    # 2) general two-phase path (forced, tiny tiles so accumulation + the
    #    parallel SO split + pad correction are all exercised)
    out_g = model_forward(x, conv_w, conv_b, bn_gamma, bn_beta,
                          force_general=True, max_tile_lanes=256)
    jax.block_until_ready(out_g)
    assert jnp.allclose(out_g, ref, atol=2e-3, rtol=2e-3), \
        float(jnp.max(jnp.abs(out_g - ref)))

    # 3) edge case matching the spec's own input shape (1, 8, 1, 1).
    x_small = jax.random.normal(jax.random.PRNGKey(1), (1, 8, 1, 1), jnp.float32)
    out_s = model_forward(x_small, conv_w, conv_b, bn_gamma, bn_beta)
    jax.block_until_ready(out_s)
    assert out_s.shape == (1, 8, 3, 3), out_s.shape
    ref_s = _reference_forward(x_small, conv_w, conv_b, bn_gamma, bn_beta)
    assert jnp.allclose(out_s, ref_s, atol=2e-3, rtol=2e-3)

    print("KERNEL_OK")
</pallas_src>

<mosaic_0001>
module attributes {stable_mosaic.version = 11 : i64} {
  func.func @_fused_kernel(%arg0: i32, %arg1: memref<8x768xf32, #tpu.memory_space<vmem>>, %arg2: memref<8x8xf32, #tpu.memory_space<vmem>>, %arg3: memref<8x1xf32, #tpu.memory_space<vmem>>, %arg4: memref<8x1xf32, #tpu.memory_space<vmem>>, %arg5: memref<8x1xf32, #tpu.memory_space<vmem>>, %arg6: memref<8x768xf32, #tpu.memory_space<vmem>>) attributes {dimension_semantics = [#tpu.dimension_semantics<arbitrary>], iteration_bounds = array<i64: 1>, scalar_prefetch = 0 : i64, scratch_operands = 0 : i64, tpu.core_type = #tpu.core_type<tc>, window_params = [{pipeline_mode = #tpu.pipeline_mode<synchronous>, transform_indices = @transform_0, window_bounds = array<i64: 8, 768>}, {pipeline_mode = #tpu.pipeline_mode<synchronous>, transform_indices = @transform_1, window_bounds = array<i64: 8, 8>}, {pipeline_mode = #tpu.pipeline_mode<synchronous>, transform_indices = @transform_2, window_bounds = array<i64: 8, 1>}, {pipeline_mode = #tpu.pipeline_mode<synchronous>, transform_indices = @transform_3, window_bounds = array<i64: 8, 1>}, {pipeline_mode = #tpu.pipeline_mode<synchronous>, transform_indices = @transform_4, window_bounds = array<i64: 8, 1>}, {pipeline_mode = #tpu.pipeline_mode<synchronous>, transform_indices = @transform_5, window_bounds = array<i64: 8, 768>}]} {
    %c0 = arith.constant 0 : index
    %c0_0 = arith.constant 0 : index
    %0 = vector.load %arg1[%c0, %c0_0] : memref<8x768xf32, #tpu.memory_space<vmem>>, vector<8x768xf32>
    %c0_1 = arith.constant 0 : index
    %c0_2 = arith.constant 0 : index
    %1 = vector.load %arg2[%c0_1, %c0_2] : memref<8x8xf32, #tpu.memory_space<vmem>>, vector<8x8xf32>
    %c0_3 = arith.constant 0 : index
    %c0_4 = arith.constant 0 : index
    %2 = vector.load %arg3[%c0_3, %c0_4] : memref<8x1xf32, #tpu.memory_space<vmem>>, vector<8x1xf32>
    %3 = vector.extract_strided_slice %1 {offsets = [0, 0], sizes = [8, 1], strides = [1, 1]} : vector<8x8xf32> to vector<8x1xf32>
    %4 = vector.broadcast %3 : vector<8x1xf32> to vector<8x768xf32>
    %5 = arith.mulf %4, %0 : vector<8x768xf32>
    %6 = vector.extract_strided_slice %1 {offsets = [0, 1], sizes = [8, 1], strides = [1, 1]} : vector<8x8xf32> to vector<8x1xf32>
    %c1_i32 = arith.constant 1 : i32
    %7 = tpu.dynamic_rotate %0 by %c1_i32 dim 0 : vector<8x768xf32>, i32 -> vector<8x768xf32>
    %8 = vector.broadcast %6 : vector<8x1xf32> to vector<8x768xf32>
    %9 = arith.mulf %8, %7 : vector<8x768xf32>
    %10 = arith.addf %5, %9 : vector<8x768xf32>
    %11 = vector.extract_strided_slice %1 {offsets = [0, 2], sizes = [8, 1], strides = [1, 1]} : vector<8x8xf32> to vector<8x1xf32>
    %c2_i32 = arith.constant 2 : i32
    %12 = tpu.dynamic_rotate %0 by %c2_i32 dim 0 : vector<8x768xf32>, i32 -> vector<8x768xf32>
    %13 = vector.broadcast %11 : vector<8x1xf32> to vector<8x768xf32>
    %14 = arith.mulf %13, %12 : vector<8x768xf32>
    %15 = arith.addf %10, %14 : vector<8x768xf32>
    %16 = vector.extract_strided_slice %1 {offsets = [0, 3], sizes = [8, 1], strides = [1, 1]} : vector<8x8xf32> to vector<8x1xf32>
    %c3_i32 = arith.constant 3 : i32
    %17 = tpu.dynamic_rotate %0 by %c3_i32 dim 0 : vector<8x768xf32>, i32 -> vector<8x768xf32>
    %18 = vector.broadcast %16 : vector<8x1xf32> to vector<8x768xf32>
    %19 = arith.mulf %18, %17 : vector<8x768xf32>
    %20 = arith.addf %15, %19 : vector<8x768xf32>
    %21 = vector.extract_strided_slice %1 {offsets = [0, 4], sizes = [8, 1], strides = [1, 1]} : vector<8x8xf32> to vector<8x1xf32>
    %c4_i32 = arith.constant 4 : i32
    %22 = tpu.dynamic_rotate %0 by %c4_i32 dim 0 : vector<8x768xf32>, i32 -> vector<8x768xf32>
    %23 = vector.broadcast %21 : vector<8x1xf32> to vector<8x768xf32>
    %24 = arith.mulf %23, %22 : vector<8x768xf32>
    %25 = arith.addf %20, %24 : vector<8x768xf32>
    %26 = vector.extract_strided_slice %1 {offsets = [0, 5], sizes = [8, 1], strides = [1, 1]} : vector<8x8xf32> to vector<8x1xf32>
    %c5_i32 = arith.constant 5 : i32
    %27 = tpu.dynamic_rotate %0 by %c5_i32 dim 0 : vector<8x768xf32>, i32 -> vector<8x768xf32>
    %28 = vector.broadcast %26 : vector<8x1xf32> to vector<8x768xf32>
    %29 = arith.mulf %28, %27 : vector<8x768xf32>
    %30 = arith.addf %25, %29 : vector<8x768xf32>
    %31 = vector.extract_strided_slice %1 {offsets = [0, 6], sizes = [8, 1], strides = [1, 1]} : vector<8x8xf32> to vector<8x1xf32>
    %c6_i32 = arith.constant 6 : i32
    %32 = tpu.dynamic_rotate %0 by %c6_i32 dim 0 : vector<8x768xf32>, i32 -> vector<8x768xf32>
    %33 = vector.broadcast %31 : vector<8x1xf32> to vector<8x768xf32>
    %34 = arith.mulf %33, %32 : vector<8x768xf32>
    %35 = arith.addf %30, %34 : vector<8x768xf32>
    %36 = vector.extract_strided_slice %1 {offsets = [0, 7], sizes = [8, 1], strides = [1, 1]} : vector<8x8xf32> to vector<8x1xf32>
    %c7_i32 = arith.constant 7 : i32
    %37 = tpu.dynamic_rotate %0 by %c7_i32 dim 0 : vector<8x768xf32>, i32 -> vector<8x768xf32>
    %38 = vector.broadcast %36 : vector<8x1xf32> to vector<8x768xf32>
    %39 = arith.mulf %38, %37 : vector<8x768xf32>
    %40 = arith.addf %35, %39 : vector<8x768xf32>
    %41 = vector.broadcast %2 : vector<8x1xf32> to vector<8x768xf32>
    %42 = arith.addf %40, %41 : vector<8x768xf32>
    %43 = arith.negf %42 : vector<8x768xf32>
    %44 = math.exp %43 : vector<8x768xf32>
    %cst = arith.constant 1.000000e+00 : f32
    %45 = vector.broadcast %cst : f32 to vector<8x768xf32>
    %46 = arith.addf %45, %44 : vector<8x768xf32>
    %47 = arith.divf %45, %46 : vector<8x768xf32>
    %48 = tpu.iota {dimensions = array<i32: 1>} : vector<8x768xi32>
    %c648_i32 = arith.constant 648 : i32
    %49 = vector.broadcast %c648_i32 : i32 to vector<8x768xi32>
    %50 = arith.cmpi slt, %48, %49 : vector<8x768xi32>
    %cst_5 = arith.constant 0.000000e+00 : f32
    %51 = vector.broadcast %cst_5 : f32 to vector<8x768xf32>
    %52 = arith.select %50, %47, %51 : vector<8x768xi1>, vector<8x768xf32>
    %cst_6 = arith.constant dense<0.000000e+00> : vector<8xf32>
    %53 = vector.multi_reduction <add>, %52, %cst_6 [1] : vector<8x768xf32> to vector<8xf32>
    %54 = vector.shape_cast %53 : vector<8xf32> to vector<8x1xf32>
    %cst_7 = arith.constant 0.00154320989 : f32
    %55 = vector.broadcast %cst_7 : f32 to vector<8x1xf32>
    %56 = arith.mulf %54, %55 : vector<8x1xf32>
    %57 = vector.broadcast %56 : vector<8x1xf32> to vector<8x768xf32>
    %58 = arith.subf %47, %57 : vector<8x768xf32>
    %cst_8 = arith.constant 0.000000e+00 : f32
    %59 = vector.broadcast %cst_8 : f32 to vector<8x768xf32>
    %60 = arith.select %50, %58, %59 : vector<8x768xi1>, vector<8x768xf32>
    %61 = arith.mulf %60, %60 : vector<8x768xf32>
    %cst_9 = arith.constant dense<0.000000e+00> : vector<8xf32>
    %62 = vector.multi_reduction <add>, %61, %cst_9 [1] : vector<8x768xf32> to vector<8xf32>
    %63 = vector.shape_cast %62 : vector<8xf32> to vector<8x1xf32>
    %cst_10 = arith.constant 0.00154320989 : f32
    %64 = vector.broadcast %cst_10 : f32 to vector<8x1xf32>
    %65 = arith.mulf %63, %64 : vector<8x1xf32>
    %cst_11 = arith.constant 9.99999974E-6 : f32
    %66 = vector.broadcast %cst_11 : f32 to vector<8x1xf32>
    %67 = arith.addf %65, %66 : vector<8x1xf32>
    %68 = math.rsqrt %67 : vector<8x1xf32>
    %c0_12 = arith.constant 0 : index
    %c0_13 = arith.constant 0 : index
    %69 = vector.load %arg4[%c0_12, %c0_13] : memref<8x1xf32, #tpu.memory_space<vmem>>, vector<8x1xf32>
    %70 = arith.mulf %69, %68 : vector<8x1xf32>
    %c0_14 = arith.constant 0 : index
    %c0_15 = arith.constant 0 : index
    %71 = vector.load %arg5[%c0_14, %c0_15] : memref<8x1xf32, #tpu.memory_space<vmem>>, vector<8x1xf32>
    %cst_16 = arith.constant 1.000000e+00 : f32
    %72 = vector.broadcast %cst_16 : f32 to vector<8x1xf32>
    %73 = arith.addf %71, %72 : vector<8x1xf32>
    %74 = arith.mulf %56, %70 : vector<8x1xf32>
    %75 = arith.subf %73, %74 : vector<8x1xf32>
    %76 = vector.broadcast %70 : vector<8x1xf32> to vector<8x768xf32>
    %77 = arith.mulf %47, %76 : vector<8x768xf32>
    %78 = vector.broadcast %75 : vector<8x1xf32> to vector<8x768xf32>
    %79 = arith.addf %77, %78 : vector<8x768xf32>
    %c0_17 = arith.constant 0 : index
    %c0_18 = arith.constant 0 : index
    %80 = vector.load %arg6[%c0_17, %c0_18] : memref<8x768xf32, #tpu.memory_space<vmem>>, vector<8x768xf32>
    tpu.vector_store %arg6[%c0_17, %c0_18], %79 {strides = array<i32>} : memref<8x768xf32, #tpu.memory_space<vmem>>, vector<8x768xf32>,
    return
  }
  func.func @transform_0(%arg0: i32) -> (i32, i32) {
    %c0_i32 = arith.constant 0 : i32
    %c0_i32_0 = arith.constant 0 : i32
    %c0_i32_1 = arith.constant 0 : i32
    return %c0_i32, %c0_i32_0 : i32, i32
  }
  func.func @transform_1(%arg0: i32) -> (i32, i32) {
    %c0_i32 = arith.constant 0 : i32
    %c0_i32_0 = arith.constant 0 : i32
    %c0_i32_1 = arith.constant 0 : i32
    return %c0_i32, %c0_i32_0 : i32, i32
  }
  func.func @transform_2(%arg0: i32) -> (i32, i32) {
    %c0_i32 = arith.constant 0 : i32
    %c0_i32_0 = arith.constant 0 : i32
    %c0_i32_1 = arith.constant 0 : i32
    return %c0_i32, %c0_i32_0 : i32, i32
  }
  func.func @transform_3(%arg0: i32) -> (i32, i32) {
    %c0_i32 = arith.constant 0 : i32
    %c0_i32_0 = arith.constant 0 : i32
    %c0_i32_1 = arith.constant 0 : i32
    return %c0_i32, %c0_i32_0 : i32, i32
  }
  func.func @transform_4(%arg0: i32) -> (i32, i32) {
    %c0_i32 = arith.constant 0 : i32
    %c0_i32_0 = arith.constant 0 : i32
    %c0_i32_1 = arith.constant 0 : i32
    return %c0_i32, %c0_i32_0 : i32, i32
  }
  func.func @transform_5(%arg0: i32) -> (i32, i32) {
    %c0_i32 = arith.constant 0 : i32
    %c0_i32_0 = arith.constant 0 : i32
    %c0_i32_1 = arith.constant 0 : i32
    return %c0_i32, %c0_i32_0 : i32, i32
  }
}

</mosaic_0001>

<llo_original>
// kernel: tpu_custom_call.1
$region0: #{tpu_custom_call.1}
  #allocation0 [shape = 'u32[]', space=smem, size = 0x4, offset = 0x4, fixed_abs, tag = 'smem constant byte address 0x4 - core index']
  #allocation1 [shape = 'u32[144,128]{1,0:T(1,128)}', space=vmem, size = 0x12000, scoped, tag = 'internal scratch']
  %s0 = inlined_call_operand.hbm [shape: f32[8,768], index: 0, kind: input, shape index: {}]
  %s1 = inlined_call_operand.vmem [shape: f32[8,8], index: 1, kind: input, shape index: {}]
  %s2 = inlined_call_operand.vmem [shape: f32[8,1], index: 2, kind: input, shape index: {}]
  %s3 = inlined_call_operand.vmem [shape: f32[8,1], index: 3, kind: input, shape index: {}]
  %s4 = inlined_call_operand.vmem [shape: f32[8,1], index: 4, kind: input, shape index: {}]
  %s5 = inlined_call_operand.hbm [shape: f32[8,768], index: 5, kind: output, shape index: {}]
  %s6 = sld [smem:[#allocation0]]
  $region34: #{tpu_custom_call.1} parent=0
    _
  %s8 = ssub.s32 1, %s6
  %s9 = scalar_select 0, %s8, %s6
  $region1: #{tpu_custom_call.1} parent=0
    #allocation2 [shape = 'u8[24576]{0}', space=vmem, size = 0x6000, scoped, tag = 'input window, operand 0, single buffered']
    #allocation3 [shape = 's32[1]{0}', space=sflag, size = 0x4, scoped, tag = 'scoped memory for tpu_custom_call.1']
    #allocation4 [shape = 's32[1]{0}', space=sflag, size = 0x4, scoped, tag = 'scoped memory for tpu_custom_call.1']
    #allocation5 [shape = 'u8[24576]{0}', space=vmem, size = 0x6000, scoped, tag = 'output window, operand 0, single buffered']
    %10 = vsyncpa [#allocation3], 0
    %11 = vsyncpa [#allocation4], 0
    // Predicated region
    $region2: #{tpu_custom_call.1} parent=1 // pred_check
      _
    $region3: #{tpu_custom_call.1} parent=1 // pred_check_branch
      %13 = sbr.rel (0) target = $region5
    $region4: #{tpu_custom_call.1} parent=1 // pred_region
      %s15 = ssub.s32 768, 768
      %16 = vsyncadd [#allocation3], %s15
      %s18 = sshll.u32 [#allocation2], 4
      %s19 = int_to_ptr.vmem [resolvable:$true] %s18
      %21 = dma.hbm_to_vmem [thread:$0]  %s0, 768, %s19, [#allocation3]
    $region5: #{tpu_custom_call.1} parent=1 // pred_fallthru
      _
    // Predicated region
    $region6: #{tpu_custom_call.1} parent=1 // pred_check
      _
    $region7: #{tpu_custom_call.1} parent=1 // pred_check_branch
      %23 = sbr.rel (0) target = $region9
    $region8: #{tpu_custom_call.1} parent=1 // pred_region
      _
    $region9: #{tpu_custom_call.1} parent=1 // pred_fallthru
      _
    // Predicated region
    $region10: #{tpu_custom_call.1} parent=1 // pred_check
      _
    $region11: #{tpu_custom_call.1} parent=1 // pred_check_branch
      %25 = sbr.rel (0) target = $region13
    $region12: #{tpu_custom_call.1} parent=1 // pred_region
      _
    $region13: #{tpu_custom_call.1} parent=1 // pred_fallthru
      _
    // Predicated region
    $region14: #{tpu_custom_call.1} parent=1 // pred_check
      _
    $region15: #{tpu_custom_call.1} parent=1 // pred_check_branch
      %27 = sbr.rel (0) target = $region17
    $region16: #{tpu_custom_call.1} parent=1 // pred_region
      _
    $region17: #{tpu_custom_call.1} parent=1 // pred_fallthru
      _
    // Predicated region
    $region18: #{tpu_custom_call.1} parent=1 // pred_check
      _
    $region19: #{tpu_custom_call.1} parent=1 // pred_check_branch
      %29 = sbr.rel (0) target = $region21
    $region20: #{tpu_custom_call.1} parent=1 // pred_region
      _
    $region21: #{tpu_custom_call.1} parent=1 // pred_fallthru
      _
    // Predicated region
    $region22: #{tpu_custom_call.1} parent=1 // pred_check
      _
    $region23: #{tpu_custom_call.1} parent=1 // pred_check_branch
      %31 = sbr.rel (0) target = $region25
    $region24: #{tpu_custom_call.1} parent=1 // pred_region
      %32 = dma.done [#allocation3], 768
    $region25: #{tpu_custom_call.1} parent=1 // pred_fallthru
      _
    %v33 = vld [vmem:[#allocation2] sm:$0xff]
    %v34 = vld [vmem:[#allocation2 + $0x8] sm:$0xff]
    %v35 = vld [vmem:[#allocation2 + $0x10] sm:$0xff]
    %v36 = vld [vmem:[#allocation2 + $0x18] sm:$0xff]
    %v37 = vld [vmem:[#allocation2 + $0x20] sm:$0xff]
    %v38 = vld [vmem:[#allocation2 + $0x28] sm:$0xff]
    %v39 = vld [vmem:[%s1] sm:$0xff]
    %v40 = vld [vmem:[%s2] sm:$0xff]
    %42 = vset.pattern.permute.xlu0 0
    %43 = vperm.xlu0 %42, %v39
    %v44 = vpop.permute.xlu0 %43
    %v46 = vmul.f32 %v44, %v33
    %v47 = vmul.f32 %v44, %v34
    %v48 = vmul.f32 %v44, %v35
    %v49 = vmul.f32 %v44, %v36
    %v50 = vmul.f32 %v44, %v37
    %v51 = vmul.f32 %v44, %v38
    %v52 = vrot.slane %v33, 7
    %v53 = vrot.slane %v34, 7
    %v54 = vrot.slane %v35, 7
    %v55 = vrot.slane %v36, 7
    %v56 = vrot.slane %v37, 7
    %v57 = vrot.slane %v38, 7
    %58 = vset.pattern.permute.xlu0 1
    %59 = vperm.xlu0 %58, %v39
    %v60 = vpop.permute.xlu0 %59
    %v62 = vmul.f32 %v60, %v52
    %v63 = vmul.f32 %v60, %v53
    %v64 = vmul.f32 %v60, %v54
    %v65 = vmul.f32 %v60, %v55
    %v66 = vmul.f32 %v60, %v56
    %v67 = vmul.f32 %v60, %v57
    %v68 = vadd.f32 %v46, %v62
    %v69 = vadd.f32 %v47, %v63
    %v70 = vadd.f32 %v48, %v64
    %v71 = vadd.f32 %v49, %v65
    %v72 = vadd.f32 %v50, %v66
    %v73 = vadd.f32 %v51, %v67
    %v74 = vrot.slane %v33, 6
    %v75 = vrot.slane %v34, 6
    %v76 = vrot.slane %v35, 6
    %v77 = vrot.slane %v36, 6
    %v78 = vrot.slane %v37, 6
    %v79 = vrot.slane %v38, 6
    %80 = vset.pattern.permute.xlu0 2
    %81 = vperm.xlu0 %80, %v39
    %v82 = vpop.permute.xlu0 %81
    %v84 = vmul.f32 %v82, %v74
    %v85 = vmul.f32 %v82, %v75
    %v86 = vmul.f32 %v82, %v76
    %v87 = vmul.f32 %v82, %v77
    %v88 = vmul.f32 %v82, %v78
    %v89 = vmul.f32 %v82, %v79
    %v90 = vadd.f32 %v68, %v84
    %v91 = vadd.f32 %v69, %v85
    %v92 = vadd.f32 %v70, %v86
    %v93 = vadd.f32 %v71, %v87
    %v94 = vadd.f32 %v72, %v88
    %v95 = vadd.f32 %v73, %v89
    %v96 = vrot.slane %v33, 5
    %v97 = vrot.slane %v34, 5
    %v98 = vrot.slane %v35, 5
    %v99 = vrot.slane %v36, 5
    %v100 = vrot.slane %v37, 5
    %v101 = vrot.slane %v38, 5
    %102 = vset.pattern.permute.xlu0 3
    %103 = vperm.xlu0 %102, %v39
    %v104 = vpop.permute.xlu0 %103
    %v106 = vmul.f32 %v104, %v96
    %v107 = vmul.f32 %v104, %v97
    %v108 = vmul.f32 %v104, %v98
    %v109 = vmul.f32 %v104, %v99
    %v110 = vmul.f32 %v104, %v100
    %v111 = vmul.f32 %v104, %v101
    %v112 = vadd.f32 %v90, %v106
    %v113 = vadd.f32 %v91, %v107
    %v114 = vadd.f32 %v92, %v108
    %v115 = vadd.f32 %v93, %v109
    %v116 = vadd.f32 %v94, %v110
    %v117 = vadd.f32 %v95, %v111
    %v118 = vrot.slane %v33, 4
    %v119 = vrot.slane %v34, 4
    %v120 = vrot.slane %v35, 4
    %v121 = vrot.slane %v36, 4
    %v122 = vrot.slane %v37, 4
    %v123 = vrot.slane %v38, 4
    %124 = vset.pattern.permute.xlu0 4
    %125 = vperm.xlu0 %124, %v39
    %v126 = vpop.permute.xlu0 %125
    %v128 = vmul.f32 %v126, %v118
    %v129 = vmul.f32 %v126, %v119
    %v130 = vmul.f32 %v126, %v120
    %v131 = vmul.f32 %v126, %v121
    %v132 = vmul.f32 %v126, %v122
    %v133 = vmul.f32 %v126, %v123
    %v134 = vadd.f32 %v112, %v128
    %v135 = vadd.f32 %v113, %v129
    %v136 = vadd.f32 %v114, %v130
    %v137 = vadd.f32 %v115, %v131
    %v138 = vadd.f32 %v116, %v132
    %v139 = vadd.f32 %v117, %v133
    %v140 = vrot.slane %v33, 3
    %v141 = vrot.slane %v34, 3
    %v142 = vrot.slane %v35, 3
    %v143 = vrot.slane %v36, 3
    %v144 = vrot.slane %v37, 3
    %v145 = vrot.slane %v38, 3
    %146 = vset.pattern.permute.xlu0 5
    %147 = vperm.xlu0 %146, %v39
    %v148 = vpop.permute.xlu0 %147
    %v150 = vmul.f32 %v148, %v140
    %v151 = vmul.f32 %v148, %v141
    %v152 = vmul.f32 %v148, %v142
    %v153 = vmul.f32 %v148, %v143
    %v154 = vmul.f32 %v148, %v144
    %v155 = vmul.f32 %v148, %v145
    %v156 = vadd.f32 %v134, %v150
    %v157 = vadd.f32 %v135, %v151
    %v158 = vadd.f32 %v136, %v152
    %v159 = vadd.f32 %v137, %v153
    %v160 = vadd.f32 %v138, %v154
    %v161 = vadd.f32 %v139, %v155
    %v162 = vrot.slane %v33, 2
    %v163 = vrot.slane %v34, 2
    %v164 = vrot.slane %v35, 2
    %v165 = vrot.slane %v36, 2
    %v166 = vrot.slane %v37, 2
    %v167 = vrot.slane %v38, 2
    %168 = vset.pattern.permute.xlu0 6
    %169 = vperm.xlu0 %168, %v39
    %v170 = vpop.permute.xlu0 %169
    %v172 = vmul.f32 %v170, %v162
    %v173 = vmul.f32 %v170, %v163
    %v174 = vmul.f32 %v170, %v164
    %v175 = vmul.f32 %v170, %v165
    %v176 = vmul.f32 %v170, %v166
    %v177 = vmul.f32 %v170, %v167
    %v178 = vadd.f32 %v156, %v172
    %v179 = vadd.f32 %v157, %v173
    %v180 = vadd.f32 %v158, %v174
    %v181 = vadd.f32 %v159, %v175
    %v182 = vadd.f32 %v160, %v176
    %v183 = vadd.f32 %v161, %v177
    %v184 = vrot.slane %v33, 1
    %v185 = vrot.slane %v34, 1
    %v186 = vrot.slane %v35, 1
    %v187 = vrot.slane %v36, 1
    %v188 = vrot.slane %v37, 1
    %v189 = vrot.slane %v38, 1
    %190 = vset.pattern.permute.xlu0 7
    %191 = vperm.xlu0 %190, %v39
    %v192 = vpop.permute.xlu0 %191
    %v194 = vmul.f32 %v192, %v184
    %v195 = vmul.f32 %v192, %v185
    %v196 = vmul.f32 %v192, %v186
    %v197 = vmul.f32 %v192, %v187
    %v198 = vmul.f32 %v192, %v188
    %v199 = vmul.f32 %v192, %v189
    %v200 = vadd.f32 %v178, %v194
    %v201 = vadd.f32 %v179, %v195
    %v202 = vadd.f32 %v180, %v196
    %v203 = vadd.f32 %v181, %v197
    %v204 = vadd.f32 %v182, %v198
    %v205 = vadd.f32 %v183, %v199
    %207 = vset.pattern.permute.xlu0 0
    %208 = vperm.xlu0 %207, %v40
    %v209 = vpop.permute.xlu0 %208
    %v211 = vadd.f32 %v200, %v209
    %v212 = vadd.f32 %v201, %v209
    %v213 = vadd.f32 %v202, %v209
    %v214 = vadd.f32 %v203, %v209
    %v215 = vadd.f32 %v204, %v209
    %v216 = vadd.f32 %v205, %v209
    %v217 = vxor.u32 %v211, 2147483648
    %v218 = vxor.u32 %v212, 2147483648
    %v219 = vxor.u32 %v213, 2147483648
    %v220 = vxor.u32 %v214, 2147483648
    %v221 = vxor.u32 %v215, 2147483648
    %v222 = vxor.u32 %v216, 2147483648
    %v223 = vmul.f32 %v217, 1.442695
    %v224 = vpow.pop %v223
    %v225 = vmul.f32 %v218, 1.442695
    %v226 = vpow.pop %v225
    %v227 = vmul.f32 %v219, 1.442695
    %v228 = vpow.pop %v227
    %v229 = vmul.f32 %v220, 1.442695
    %v230 = vpow.pop %v229
    %v231 = vmul.f32 %v221, 1.442695
    %v232 = vpow.pop %v231
    %v233 = vmul.f32 %v222, 1.442695
    %v234 = vpow.pop %v233
    %v235 = vadd.f32 %v224, 1.0
    %v236 = vadd.f32 %v226, 1.0
    %v237 = vadd.f32 %v228, 1.0
    %v238 = vadd.f32 %v230, 1.0
    %v239 = vadd.f32 %v232, 1.0
    %v240 = vadd.f32 %v234, 1.0
    %v241 = vrcp.pop %v235
    %v242 = vmul.f32 1.0, %v241
    %v243 = vrcp.pop %v236
    %v244 = vmul.f32 1.0, %v243
    %v245 = vrcp.pop %v237
    %v246 = vmul.f32 1.0, %v245
    %v247 = vrcp.pop %v238
    %v248 = vmul.f32 1.0, %v247
    %v249 = vrcp.pop %v239
    %v250 = vmul.f32 1.0, %v249
    %v251 = vrcp.pop %v240
    %v252 = vmul.f32 1.0, %v251
    %v253 = vlaneseq
    %v254 = vand.u32 %v253, 127
    %v255 = vadd.s32 %v254, 128
    %v256 = vadd.s32 %v254, 256
    %v257 = vadd.s32 %v254, 384
    %v258 = vadd.s32 %v254, 512
    %v259 = vadd.s32 %v254, 640
    %vm260 = vcmp.lt.s32.totalorder %v254, 648
    %vm261 = vcmp.lt.s32.totalorder %v255, 648
    %vm262 = vcmp.lt.s32.totalorder %v256, 648
    %vm263 = vcmp.lt.s32.totalorder %v257, 648
    %vm264 = vcmp.lt.s32.totalorder %v258, 648
    %vm265 = vcmp.lt.s32.totalorder %v259, 648
    %v266 = vsel %vm260, %v242, 0.0
    %v267 = vsel %vm261, %v244, 0.0
    %v268 = vsel %vm262, %v246, 0.0
    %v269 = vsel %vm263, %v248, 0.0
    %v270 = vsel %vm264, %v250, 0.0
    %v271 = vsel %vm265, %v252, 0.0
    %v272 = vadd.f32 %v266, %v267
    %v273 = vadd.f32 %v272, %v268
    %v274 = vadd.f32 %v273, %v269
    %v275 = vadd.f32 %v274, %v270
    %v276 = vadd.f32 %v275, %v271
    %277 = vadd.xlane.f32.xlu0 %v276
    %v278 = vpop.xlane.xlu0 %277
    %v279 = vmul.f32 %v278, 0.0015432099
    %v280 = vsub.f32 %v242, %v279
    %v281 = vsub.f32 %v244, %v279
    %v282 = vsub.f32 %v246, %v279
    %v283 = vsub.f32 %v248, %v279
    %v284 = vsub.f32 %v250, %v279
    %v285 = vsub.f32 %v252, %v279
    %v286 = vsel %vm260, %v280, 0.0
    %v287 = vsel %vm261, %v281, 0.0
    %v288 = vsel %vm262, %v282, 0.0
    %v289 = vsel %vm263, %v283, 0.0
    %v290 = vsel %vm264, %v284, 0.0
    %v291 = vsel %vm265, %v285, 0.0
    %v292 = vmul.f32 %v286, %v286
    %v293 = vmul.f32 %v287, %v287
    %v294 = vmul.f32 %v288, %v288
    %v295 = vmul.f32 %v289, %v289
    %v296 = vmul.f32 %v290, %v290
    %v297 = vmul.f32 %v291, %v291
    %v298 = vadd.f32 %v292, %v293
    %v299 = vadd.f32 %v298, %v294
    %v300 = vadd.f32 %v299, %v295
    %v301 = vadd.f32 %v300, %v296
    %v302 = vadd.f32 %v301, %v297
    %303 = vadd.xlane.f32.xlu0 %v302
    %v304 = vpop.xlane.xlu0 %303
    %v305 = vmul.f32 %v304, 0.0015432099
    %v306 = vadd.f32 %v305, 1e-05
    %v307 = vrsqrt.pop %v306
    %v308 = vld [vmem:[%s3] sm:$0xff]
    %v309 = vmul.f32 %v308, %v307
    %v310 = vld [vmem:[%s4] sm:$0xff]
    %v311 = vadd.f32 %v310, 1.0
    %v312 = vmul.f32 %v279, %v309
    %v313 = vsub.f32 %v311, %v312
    %315 = vset.pattern.permute.xlu0 0
    %316 = vperm.xlu0 %315, %v309
    %v317 = vpop.permute.xlu0 %316
    %v319 = vmul.f32 %v242, %v317
    %v320 = vmul.f32 %v244, %v317
    %v321 = vmul.f32 %v246, %v317
    %v322 = vmul.f32 %v248, %v317
    %v323 = vmul.f32 %v250, %v317
    %v324 = vmul.f32 %v252, %v317
    %326 = vset.pattern.permute.xlu0 0
    %327 = vperm.xlu0 %326, %v313
    %v328 = vpop.permute.xlu0 %327
    %v330 = vadd.f32 %v319, %v328
    %v331 = vadd.f32 %v320, %v328
    %v332 = vadd.f32 %v321, %v328
    %v333 = vadd.f32 %v322, %v328
    %v334 = vadd.f32 %v323, %v328
    %v335 = vadd.f32 %v324, %v328
    %336 = vst [vmem:[#allocation5] sm:$0xff] %v330
    %337 = vst [vmem:[#allocation5 + $0x8] sm:$0xff] %v331
    %338 = vst [vmem:[#allocation5 + $0x10] sm:$0xff] %v332
    %339 = vst [vmem:[#allocation5 + $0x18] sm:$0xff] %v333
    %340 = vst [vmem:[#allocation5 + $0x20] sm:$0xff] %v334
    %341 = vst [vmem:[#allocation5 + $0x28] sm:$0xff] %v335
    // Predicated region
    $region26: #{tpu_custom_call.1} parent=1 // pred_check
      _
    $region27: #{tpu_custom_call.1} parent=1 // pred_check_branch
      %343 = sbr.rel (0) target = $region29
    $region28: #{tpu_custom_call.1} parent=1 // pred_region
      %s345 = ssub.s32 768, 768
      %346 = vsyncadd [#allocation4], %s345
      %s348 = sshll.u32 [#allocation5], 4
      %s349 = int_to_ptr.vmem [resolvable:$true] %s348
      %351 = dma.vmem_to_hbm [thread:$0]  %s349, 768, %s5, [#allocation4]
    $region29: #{tpu_custom_call.1} parent=1 // pred_fallthru
      _
    // Predicated region
    $region30: #{tpu_custom_call.1} parent=1 // pred_check
      _
    $region31: #{tpu_custom_call.1} parent=1 // pred_check_branch
      %353 = sbr.rel (0) target = $region33
    $region32: #{tpu_custom_call.1} parent=1 // pred_region
      %354 = dma.done [#allocation4], 768
    $region33: #{tpu_custom_call.1} parent=1 // pred_fallthru
      _
    %355 = vsyncpa [#allocation3], 1
    %356 = vsyncpa [#allocation4], 1

</llo_original>
